<compile_context>
chip_gen: v5e
topology: v5e:2x2
jax: 0.10.0
libtpu: 0.0.40
codegen_flags: <defaults>
</compile_context>

<pallas_src>
import functools
import math

import numpy as np
import jax
import jax.numpy as jnp
from jax import lax
from jax.experimental import pallas as pl
from jax.experimental.pallas import tpu as pltpu


# ----------------------------------------------------------------------------
# Kernel A: per-head / per-L_Q-tile sparsity measure
#   M(q) = max_{sampled s} Q[q]·K[s]  -  (1/L_K) * sum_{sampled s} Q[q]·K[s]
# The sampled keys are described by a dense bf16 multiplicity matrix `counts`
# (duplicates counted, exactly like torch.randint sampling).  The "max" term
# reads the full Q·K^T tile; the "sum" term is the MXU contraction counts @ K
# followed by a D-wide row sum — no full-tile VPU multiply.
# ----------------------------------------------------------------------------
def _sparsity_measure_kernel(counts_ref, q_ref, k_ref, m_ref, *, inv_lk):
    q = q_ref[0]                              # (tq, D)    bf16
    k = k_ref[0]                              # (L_K, D)   bf16
    counts = counts_ref[...]                  # (tq, L_K)  bf16 (small ints)

    s = lax.dot_general(q, k, (((1,), (1,)), ((), ())),
                        preferred_element_type=jnp.float32)       # (tq, L_K) f32
    sampled = counts > 0                                          # bf16 compare, no f32 copy
    m_max = jnp.max(jnp.where(sampled, s, -jnp.inf), axis=-1)     # (tq,)

    ck = lax.dot_general(counts, k, (((1,), (0,)), ((), ())),
                         preferred_element_type=jnp.float32)      # (tq, D) f32
    m_sum = jnp.sum(q.astype(jnp.float32) * ck, axis=-1)          # (tq,)

    m = m_max - m_sum * inv_lk
    m_ref[...] = m.reshape(1, 1, m.shape[0])                      # lane-dense store


# ----------------------------------------------------------------------------
# Kernel B: per-head sparse attention for the pre-gathered top-u queries:
#   scores = Q_red @ K^T, direct causal ProbMask, softmax with deferred
#   normalization, attn @ V.  Output is ONLY the u_pad updated rows — the
#   scatter into the initial context happens in the wrapper.
# Sentinel (padding) rows use a clipped-gather query and are never masked, so
# they stay finite; they are dropped before the wrapper scatter.
# ----------------------------------------------------------------------------
def _prob_attn_kernel(idx_col_ref, q_ref, k_ref, v_ref, o_ref, *, scale, mask_flag):
    q_red = q_ref[0]                          # (u_pad, D)  bf16
    k = k_ref[0]                              # (L_K, D)    bf16
    v = v_ref[0]                              # (L_K, D)    bf16
    idx_col = idx_col_ref[0]                  # (u_pad, 1)  int32

    scores = lax.dot_general(q_red, k, (((1,), (1,)), ((), ())),
                             preferred_element_type=jnp.float32) * scale   # (u_pad, L_K)

    if mask_flag:
        # ProbMask: for query position p = idx[i], mask keys j > p (strict).
        cc = lax.broadcasted_iota(jnp.int32, scores.shape, 1)
        scores = jnp.where(cc > idx_col, -jnp.inf, scores)

    # softmax over keys, normalization deferred past the @V matmul
    m = jnp.max(scores, axis=-1, keepdims=True)
    p = jnp.exp(scores - m)                                        # (u_pad, L_K) f32
    denom = jnp.sum(p, axis=-1, keepdims=True)                     # (u_pad, 1)
    upd = lax.dot_general(p.astype(v.dtype), v, (((1,), (0,)), ((), ())),
                          preferred_element_type=jnp.float32)      # (u_pad, D)
    upd = upd * pl.reciprocal(denom, approx=True)
    o_ref[0] = upd.astype(o_ref.dtype)


def _pick_lq_tile(l_q, l_k, budget_bytes=24 * 1024 * 1024):
    """Largest L_Q tile whose tq-proportional VMEM footprint fits the budget.

    Per tq-row bytes ~= counts (bf16, double-buffered) + ~2 live f32 (tq, L_K)
    temporaries (scores, masked-select) = L_K * 12.  Budget is conservative
    enough for v7x's 64 MiB physical VMEM while letting v5e/v6e use big tiles.
    """
    per_row = l_k * (2 * 2 + 2 * 4)
    cap = max(8, budget_bytes // max(per_row, 1))
    if l_q <= cap:
        return l_q
    for t in (2048, 1024, 512, 256, 128, 64, 32, 16, 8):
        if t <= cap and l_q % t == 0:
            return t
    return l_q   # fallback: single tile (correct, possibly over budget)


# ----------------------------------------------------------------------------
# jitted core: both pallas_calls + the glue (top-k, gathers, scatter)
# ----------------------------------------------------------------------------
@functools.partial(jax.jit,
                   static_argnames=("factor", "scale", "mask_flag", "matmul_dtype"))
def _prob_attention_impl(queries, keys, values, rng, *, factor, scale,
                         mask_flag, matmul_dtype):
    B, L_Q, H, D = queries.shape
    _, L_K, _, _ = keys.shape
    if mask_flag:
        assert L_Q == L_K
    BH = B * H
    out_dtype = values.dtype

    # (B, L, H, D) -> (B*H, L, D) bf16.  Under jit the transpose fuses with the
    # f32->bf16 cast (single read/write pass per tensor).
    q = jnp.transpose(queries, (0, 2, 1, 3)).reshape(BH, L_Q, D).astype(matmul_dtype)
    k = jnp.transpose(keys,    (0, 2, 1, 3)).reshape(BH, L_K, D).astype(matmul_dtype)
    v = jnp.transpose(values,  (0, 2, 1, 3)).reshape(BH, L_K, D).astype(matmul_dtype)

    U_part = min(factor * int(np.ceil(np.log(L_K))), L_K)   # sampled keys per query
    u = min(factor * int(np.ceil(np.log(L_Q))), L_Q)        # selected queries per head
    u_pad = int(np.ceil(u / 8.0)) * 8                       # full sublanes in Kernel B

    # Random key sample shared across (B, H), like torch.randint(L_K, (L_Q, sample_k)).
    index_sample = jax.random.randint(rng, (L_Q, U_part), 0, L_K, dtype=jnp.int32)
    # Dense multiplicity matrix (duplicates counted).
    # TODO(synk): for very long L (>8K) pass index_sample via scalar prefetch /
    # int8 counts instead of this O(L^2) bf16 matrix.
    counts = jnp.zeros((L_Q, L_K), jnp.float32).at[
        jnp.arange(L_Q)[:, None], index_sample].add(1.0).astype(matmul_dtype)

    tq = _pick_lq_tile(L_Q, L_K)
    n_lq = L_Q // tq

    # --- Kernel A: sparsity measure M per query --------------------------------
    # grid order (lq, bh): counts depends only on lq -> stays resident across bh.
    cost_a = pl.CostEstimate(
        flops=int(4 * BH * L_Q * L_K * D + 3 * BH * L_Q * L_K),
        transcendentals=0,
        bytes_accessed=int(2 * L_Q * L_K + 2 * BH * (L_Q + n_lq * L_K) * D
                           + 4 * BH * L_Q))
    M3 = pl.pallas_call(
        functools.partial(_sparsity_measure_kernel, inv_lk=1.0 / float(L_K)),
        grid=(n_lq, BH),
        in_specs=[
            pl.BlockSpec((tq, L_K), lambda lq, bh: (lq, 0)),
            pl.BlockSpec((1, tq, D), lambda lq, bh: (bh, lq, 0)),
            pl.BlockSpec((1, L_K, D), lambda lq, bh: (bh, 0, 0)),
        ],
        out_specs=pl.BlockSpec((1, 1, tq), lambda lq, bh: (bh, 0, lq)),
        out_shape=jax.ShapeDtypeStruct((BH, 1, L_Q), jnp.float32),
        compiler_params=pltpu.CompilerParams(
            dimension_semantics=("parallel", "parallel"),
            vmem_limit_bytes=40 * 1024 * 1024),
        cost_estimate=cost_a,
    )(counts, q, k)
    M = M3[:, 0, :]                                          # (BH, L_Q), lane-dense

    # top-u queries per head (tiny reduction; plain JAX glue like torch.topk)
    _, index = lax.top_k(M, u)                               # (BH, u)
    index = index.astype(jnp.int32)
    if u_pad > u:
        # sentinel index == L_Q: never masked; its (clipped-gather) row result
        # is dropped before the scatter, so it contributes nothing.
        pad = jnp.full((BH, u_pad - u), L_Q, dtype=jnp.int32)
        index_p = jnp.concatenate([index, pad], axis=1)
    else:
        index_p = index
    idx_col = index_p[:, :, None]                            # (BH, u_pad, 1)

    # Gather the selected queries in the wrapper: only (BH, u_pad, D) bf16
    # enters Kernel B (no full-Q stream, no one-hot gather matmul).
    gather_idx = jnp.minimum(index_p, L_Q - 1)
    q_red = jnp.take_along_axis(q, gather_idx[:, :, None], axis=1)   # (BH, u_pad, D)

    scale_val = float(scale) if scale is not None else 1.0 / math.sqrt(D)

    # --- Kernel B: sparse attention, returns only the u_pad updated rows -------
    cost_b = pl.CostEstimate(
        flops=int(4 * BH * u_pad * L_K * D + 6 * BH * u_pad * L_K),
        transcendentals=int(BH * u_pad * L_K),
        bytes_accessed=int(BH * (2 * 2 * L_K * D + 2 * u_pad * D + 4 * u_pad
                                 + u_pad * D * np.dtype(out_dtype).itemsize)))
    upd = pl.pallas_call(
        functools.partial(_prob_attn_kernel, scale=scale_val, mask_flag=mask_flag),
        grid=(BH,),
        in_specs=[
            pl.BlockSpec((1, u_pad, 1), lambda bh: (bh, 0, 0)),
            pl.BlockSpec((1, u_pad, D), lambda bh: (bh, 0, 0)),
            pl.BlockSpec((1, L_K, D), lambda bh: (bh, 0, 0)),
            pl.BlockSpec((1, L_K, D), lambda bh: (bh, 0, 0)),
        ],
        out_specs=pl.BlockSpec((1, u_pad, D), lambda bh: (bh, 0, 0)),
        out_shape=jax.ShapeDtypeStruct((BH, u_pad, D), out_dtype),
        compiler_params=pltpu.CompilerParams(
            dimension_semantics=("parallel",),
            vmem_limit_bytes=32 * 1024 * 1024),
        cost_estimate=cost_b,
    )(idx_col, q_red, k, v)

    # Initial context built directly in the public (B, L_Q, H, D) layout (no
    # output transpose), then an in-place row scatter of the u updated rows.
    if mask_flag:
        ctx0 = jnp.cumsum(values, axis=1)                          # (B, L_Q, H, D)
    else:
        ctx0 = jnp.broadcast_to(jnp.mean(values, axis=1, keepdims=True),
                                (B, L_Q, H, D)).astype(out_dtype)
    upd_r = upd.reshape(B, H, u_pad, D)[:, :, :u, :].astype(ctx0.dtype)  # drop pad rows
    index_bh = index.reshape(B, H, u)
    b_idx = jnp.arange(B)[:, None, None]
    h_idx = jnp.arange(H)[None, :, None]
    context = ctx0.at[b_idx, index_bh, h_idx, :].set(upd_r, unique_indices=True)

    aux = dict(index_sample=index_sample, index=index, M=M)
    return context, aux


# ----------------------------------------------------------------------------
# Wrapper: PyTorch ProbAttention.forward equivalent.
# ----------------------------------------------------------------------------
def prob_attention_forward(queries, keys, values, attn_mask=None, *, rng,
                           factor=5, scale=None, mask_flag=True,
                           output_attention=False, return_aux=False,
                           matmul_dtype=jnp.bfloat16):
    del attn_mask  # with mask_flag=True the module builds its own ProbMask
    assert not output_attention  # TODO(synk): dense attention-map output path not implemented
    context, aux = _prob_attention_impl(
        queries, keys, values, rng,
        factor=factor, scale=scale, mask_flag=mask_flag, matmul_dtype=matmul_dtype)
    if return_aux:
        return context, None, aux
    return context, None


# ----------------------------------------------------------------------------
# Pure-JAX reference (same sampled indices / same selected queries, same
# bf16-rounded matmul operands so the comparison is tight).
# ----------------------------------------------------------------------------
def _reference(q32, k32, v32, index_sample, index, scale, mm_dtype):
    BH, L_Q, D = q32.shape
    L_K = k32.shape[1]
    hp = jax.lax.Precision.HIGHEST
    qb = q32.astype(mm_dtype).astype(jnp.float32)
    kb = k32.astype(mm_dtype).astype(jnp.float32)
    vb = v32.astype(mm_dtype).astype(jnp.float32)

    K_sample = kb[:, index_sample, :]                                 # (BH, L_Q, S, D)
    QK_sample = jnp.einsum('bqd,bqsd->bqs', qb, K_sample, precision=hp)
    M = QK_sample.max(-1) - QK_sample.sum(-1) / L_K

    q_red = jnp.take_along_axis(qb, index[:, :, None], axis=1)        # (BH, u, D)
    scores = jnp.einsum('bud,bkd->buk', q_red, kb, precision=hp) * scale
    mask = jnp.arange(L_K)[None, None, :] > index[:, :, None]
    scores = jnp.where(mask, -jnp.inf, scores)
    attn = jax.nn.softmax(scores, axis=-1)
    attn = attn.astype(mm_dtype).astype(jnp.float32)
    upd = jnp.einsum('buk,bkd->bud', attn, vb, precision=hp)
    ctx = jnp.cumsum(v32, axis=1)
    ctx = ctx.at[jnp.arange(BH)[:, None], index, :].set(upd)
    return M, ctx


if __name__ == "__main__":
    key = jax.random.PRNGKey(0)
    kq, kk, kv, ks = jax.random.split(key, 4)
    B, L, H, D = 2, 64, 4, 32                                 # factor=5 -> u = U_part = 25
    queries = jax.random.normal(kq, (B, L, H, D), dtype=jnp.float32)
    keys_ = jax.random.normal(kk, (B, L, H, D), dtype=jnp.float32)
    values = jax.random.normal(kv, (B, L, H, D), dtype=jnp.float32)

    context, attn, aux = prob_attention_forward(
        queries, keys_, values, attn_mask=None, rng=ks, return_aux=True)
    context = jax.block_until_ready(context)
    assert context.shape == (B, L, H, D)
    assert attn is None

    # correctness check against a pure-JAX reference using identical random
    # sample indices and identical top-u query indices
    q32 = jnp.transpose(queries, (0, 2, 1, 3)).reshape(B * H, L, D).astype(jnp.float32)
    k32 = jnp.transpose(keys_, (0, 2, 1, 3)).reshape(B * H, L, D).astype(jnp.float32)
    v32 = jnp.transpose(values, (0, 2, 1, 3)).reshape(B * H, L, D).astype(jnp.float32)
    M_ref, ctx_ref = _reference(q32, k32, v32, aux["index_sample"], aux["index"],
                                1.0 / math.sqrt(D), jnp.bfloat16)
    np.testing.assert_allclose(np.asarray(aux["M"]), np.asarray(M_ref),
                               rtol=2e-2, atol=2e-2)
    ctx_ref = ctx_ref.reshape(B, H, L, D).transpose(0, 2, 1, 3)
    np.testing.assert_allclose(np.asarray(context), np.asarray(ctx_ref),
                               rtol=2e-2, atol=2e-2)

    print("KERNEL_OK")
</pallas_src>

<mosaic_0001>
module attributes {stable_mosaic.version = 11 : i64} {
  func.func @_sparsity_measure_kernel(%arg0: i32, %arg1: i32, %arg2: memref<64x64xbf16, #tpu.memory_space<vmem>>, %arg3: memref<1x64x32xbf16, #tpu.memory_space<vmem>>, %arg4: memref<1x64x32xbf16, #tpu.memory_space<vmem>>, %arg5: memref<1x1x64xf32, #tpu.memory_space<vmem>>) attributes {dimension_semantics = [#tpu.dimension_semantics<parallel>, #tpu.dimension_semantics<parallel>], iteration_bounds = array<i64: 1, 8>, scalar_prefetch = 0 : i64, scratch_operands = 0 : i64, tpu.core_type = #tpu.core_type<tc>, window_params = [{transform_indices = @transform_0, window_bounds = array<i64: 64, 64>}, {transform_indices = @transform_1, window_bounds = array<i64: 1, 64, 32>}, {transform_indices = @transform_2, window_bounds = array<i64: 1, 64, 32>}, {transform_indices = @transform_3, window_bounds = array<i64: 1, 1, 64>}]} {
    %c0 = arith.constant 0 : index
    %c0_0 = arith.constant 0 : index
    %c0_1 = arith.constant 0 : index
    %0 = vector.load %arg3[%c0, %c0_0, %c0_1] : memref<1x64x32xbf16, #tpu.memory_space<vmem>>, vector<1x64x32xbf16>
    %1 = vector.shape_cast %0 : vector<1x64x32xbf16> to vector<64x32xbf16>
    %c0_2 = arith.constant 0 : index
    %c0_3 = arith.constant 0 : index
    %c0_4 = arith.constant 0 : index
    %2 = vector.load %arg4[%c0_2, %c0_3, %c0_4] : memref<1x64x32xbf16, #tpu.memory_space<vmem>>, vector<1x64x32xbf16>
    %3 = vector.shape_cast %2 : vector<1x64x32xbf16> to vector<64x32xbf16>
    %c0_5 = arith.constant 0 : index
    %c0_6 = arith.constant 0 : index
    %4 = vector.load %arg2[%c0_5, %c0_6] : memref<64x64xbf16, #tpu.memory_space<vmem>>, vector<64x64xbf16>
    %cst = arith.constant dense<0.000000e+00> : vector<64x64xf32>
    %5 = tpu.matmul %1, %3, %cst {dimension_numbers = #tpu.dot_dimension_numbers<[1], [1], [0], [0], [0, 0, 1, 0], [], []>} : vector<64x32xbf16>, vector<64x32xbf16>, vector<64x64xf32> -> vector<64x64xf32>
    %cst_7 = arith.constant 0.000000e+00 : bf16
    %6 = vector.broadcast %cst_7 : bf16 to vector<64x64xbf16>
    %7 = arith.cmpf ogt, %4, %6 : vector<64x64xbf16>
    %cst_8 = arith.constant 0xFF800000 : f32
    %8 = vector.broadcast %cst_8 : f32 to vector<64x64xf32>
    %9 = arith.select %7, %5, %8 : vector<64x64xi1>, vector<64x64xf32>
    %cst_9 = arith.constant dense<0xFF800000> : vector<64xf32>
    %10 = vector.multi_reduction <maximumf>, %9, %cst_9 [1] : vector<64x64xf32> to vector<64xf32>
    %cst_10 = arith.constant dense<0.000000e+00> : vector<64x32xf32>
    %11 = tpu.matmul %4, %3, %cst_10 {dimension_numbers = #tpu.dot_dimension_numbers<[1], [0], [0], [1], [0, 0, 1, 1], [], []>} : vector<64x64xbf16>, vector<64x32xbf16>, vector<64x32xf32> -> vector<64x32xf32>
    %12 = arith.extf %1 : vector<64x32xbf16> to vector<64x32xf32>
    %13 = arith.mulf %12, %11 : vector<64x32xf32>
    %cst_11 = arith.constant dense<0.000000e+00> : vector<64xf32>
    %14 = vector.multi_reduction <add>, %13, %cst_11 [1] : vector<64x32xf32> to vector<64xf32>
    %cst_12 = arith.constant 1.562500e-02 : f32
    %15 = vector.broadcast %cst_12 : f32 to vector<64xf32>
    %16 = arith.mulf %14, %15 : vector<64xf32>
    %17 = arith.subf %10, %16 : vector<64xf32>
    %18 = vector.shape_cast %17 : vector<64xf32> to vector<1x1x64xf32>
    %c0_13 = arith.constant 0 : index
    %c0_14 = arith.constant 0 : index
    %c0_15 = arith.constant 0 : index
    %19 = vector.load %arg5[%c0_13, %c0_14, %c0_15] : memref<1x1x64xf32, #tpu.memory_space<vmem>>, vector<1x1x64xf32>
    tpu.vector_store %arg5[%c0_13, %c0_14, %c0_15], %18 {strides = array<i32>} : memref<1x1x64xf32, #tpu.memory_space<vmem>>, vector<1x1x64xf32>,
    return
  }
  func.func @transform_0(%arg0: i32, %arg1: i32) -> (i32, i32) {
    %c0_i32 = arith.constant 0 : i32
    %c0_i32_0 = arith.constant 0 : i32
    return %arg0, %c0_i32 : i32, i32
  }
  func.func @transform_1(%arg0: i32, %arg1: i32) -> (i32, i32, i32) {
    %c0_i32 = arith.constant 0 : i32
    %c0_i32_0 = arith.constant 0 : i32
    return %arg1, %arg0, %c0_i32 : i32, i32, i32
  }
  func.func @transform_2(%arg0: i32, %arg1: i32) -> (i32, i32, i32) {
    %c0_i32 = arith.constant 0 : i32
    %c0_i32_0 = arith.constant 0 : i32
    %c0_i32_1 = arith.constant 0 : i32
    return %arg1, %c0_i32, %c0_i32_0 : i32, i32, i32
  }
  func.func @transform_3(%arg0: i32, %arg1: i32) -> (i32, i32, i32) {
    %c0_i32 = arith.constant 0 : i32
    %c0_i32_0 = arith.constant 0 : i32
    return %arg1, %c0_i32, %arg0 : i32, i32, i32
  }
}

module attributes {stable_mosaic.version = 11 : i64} {
  func.func @_prob_attn_kernel(%arg0: i32, %arg1: memref<1x32x1xi32, #tpu.memory_space<vmem>>, %arg2: memref<1x32x32xbf16, #tpu.memory_space<vmem>>, %arg3: memref<1x64x32xbf16, #tpu.memory_space<vmem>>, %arg4: memref<1x64x32xbf16, #tpu.memory_space<vmem>>, %arg5: memref<1x32x32xf32, #tpu.memory_space<vmem>>) attributes {dimension_semantics = [#tpu.dimension_semantics<parallel>], iteration_bounds = array<i64: 8>, scalar_prefetch = 0 : i64, scratch_operands = 0 : i64, tpu.core_type = #tpu.core_type<tc>, window_params = [{transform_indices = @transform_0, window_bounds = array<i64: 1, 32, 1>}, {transform_indices = @transform_1, window_bounds = array<i64: 1, 32, 32>}, {transform_indices = @transform_2, window_bounds = array<i64: 1, 64, 32>}, {transform_indices = @transform_3, window_bounds = array<i64: 1, 64, 32>}, {transform_indices = @transform_4, window_bounds = array<i64: 1, 32, 32>}]} {
    %c0 = arith.constant 0 : index
    %c0_0 = arith.constant 0 : index
    %c0_1 = arith.constant 0 : index
    %0 = vector.load %arg2[%c0, %c0_0, %c0_1] : memref<1x32x32xbf16, #tpu.memory_space<vmem>>, vector<1x32x32xbf16>
    %1 = vector.shape_cast %0 : vector<1x32x32xbf16> to vector<32x32xbf16>
    %c0_2 = arith.constant 0 : index
    %c0_3 = arith.constant 0 : index
    %c0_4 = arith.constant 0 : index
    %2 = vector.load %arg3[%c0_2, %c0_3, %c0_4] : memref<1x64x32xbf16, #tpu.memory_space<vmem>>, vector<1x64x32xbf16>
    %3 = vector.shape_cast %2 : vector<1x64x32xbf16> to vector<64x32xbf16>
    %c0_5 = arith.constant 0 : index
    %c0_6 = arith.constant 0 : index
    %c0_7 = arith.constant 0 : index
    %4 = vector.load %arg4[%c0_5, %c0_6, %c0_7] : memref<1x64x32xbf16, #tpu.memory_space<vmem>>, vector<1x64x32xbf16>
    %5 = vector.shape_cast %4 : vector<1x64x32xbf16> to vector<64x32xbf16>
    %c0_8 = arith.constant 0 : index
    %c0_9 = arith.constant 0 : index
    %c0_10 = arith.constant 0 : index
    %6 = vector.load %arg1[%c0_8, %c0_9, %c0_10] : memref<1x32x1xi32, #tpu.memory_space<vmem>>, vector<1x32x1xi32>
    %7 = vector.shape_cast %6 : vector<1x32x1xi32> to vector<32x1xi32>
    %cst = arith.constant dense<0.000000e+00> : vector<32x64xf32>
    %8 = tpu.matmul %1, %3, %cst {dimension_numbers = #tpu.dot_dimension_numbers<[1], [1], [0], [0], [0, 0, 1, 0], [], []>} : vector<32x32xbf16>, vector<64x32xbf16>, vector<32x64xf32> -> vector<32x64xf32>
    %cst_11 = arith.constant 0.176776692 : f32
    %9 = vector.broadcast %cst_11 : f32 to vector<32x64xf32>
    %10 = arith.mulf %8, %9 : vector<32x64xf32>
    %11 = tpu.iota {dimensions = array<i32: 1>} : vector<32x64xi32>
    %12 = vector.broadcast %7 : vector<32x1xi32> to vector<32x64xi32>
    %13 = arith.cmpi sgt, %11, %12 : vector<32x64xi32>
    %cst_12 = arith.constant 0xFF800000 : f32
    %14 = vector.broadcast %cst_12 : f32 to vector<32x64xf32>
    %15 = arith.select %13, %14, %10 : vector<32x64xi1>, vector<32x64xf32>
    %cst_13 = arith.constant dense<0xFF800000> : vector<32xf32>
    %16 = vector.multi_reduction <maximumf>, %15, %cst_13 [1] : vector<32x64xf32> to vector<32xf32>
    %17 = vector.shape_cast %16 : vector<32xf32> to vector<32x1xf32>
    %18 = vector.broadcast %17 : vector<32x1xf32> to vector<32x64xf32>
    %19 = arith.subf %15, %18 : vector<32x64xf32>
    %20 = math.exp %19 : vector<32x64xf32>
    %cst_14 = arith.constant dense<0.000000e+00> : vector<32xf32>
    %21 = vector.multi_reduction <add>, %20, %cst_14 [1] : vector<32x64xf32> to vector<32xf32>
    %22 = vector.shape_cast %21 : vector<32xf32> to vector<32x1xf32>
    %23 = arith.truncf %20 : vector<32x64xf32> to vector<32x64xbf16>
    %cst_15 = arith.constant dense<0.000000e+00> : vector<32x32xf32>
    %24 = tpu.matmul %23, %5, %cst_15 {dimension_numbers = #tpu.dot_dimension_numbers<[1], [0], [0], [1], [0, 0, 1, 1], [], []>} : vector<32x64xbf16>, vector<64x32xbf16>, vector<32x32xf32> -> vector<32x32xf32>
    %25 = tpu.reciprocal %22 {approx = true} : vector<32x1xf32> -> vector<32x1xf32>
    %26 = vector.broadcast %25 : vector<32x1xf32> to vector<32x32xf32>
    %27 = arith.mulf %24, %26 : vector<32x32xf32>
    %c0_16 = arith.constant 0 : index
    %c0_17 = arith.constant 0 : index
    %c0_18 = arith.constant 0 : index
    %28 = vector.load %arg5[%c0_16, %c0_17, %c0_18] : memref<1x32x32xf32, #tpu.memory_space<vmem>>, vector<1x32x32xf32>
    %29 = vector.shape_cast %28 : vector<1x32x32xf32> to vector<32x32xf32>
    %30 = vector.shape_cast %27 : vector<32x32xf32> to vector<1x32x32xf32>
    tpu.vector_store %arg5[%c0_16, %c0_17, %c0_18], %30 {strides = array<i32>} : memref<1x32x32xf32, #tpu.memory_space<vmem>>, vector<1x32x32xf32>,
    return
  }
  func.func @transform_0(%arg0: i32) -> (i32, i32, i32) {
    %c0_i32 = arith.constant 0 : i32
    %c0_i32_0 = arith.constant 0 : i32
    %c0_i32_1 = arith.constant 0 : i32
    return %arg0, %c0_i32, %c0_i32_0 : i32, i32, i32
  }
  func.func @transform_1(%arg0: i32) -> (i32, i32, i32) {
    %c0_i32 = arith.constant 0 : i32
    %c0_i32_0 = arith.constant 0 : i32
    %c0_i32_1 = arith.constant 0 : i32
    return %arg0, %c0_i32, %c0_i32_0 : i32, i32, i32
  }
  func.func @transform_2(%arg0: i32) -> (i32, i32, i32) {
    %c0_i32 = arith.constant 0 : i32
    %c0_i32_0 = arith.constant 0 : i32
    %c0_i32_1 = arith.constant 0 : i32
    return %arg0, %c0_i32, %c0_i32_0 : i32, i32, i32
  }
  func.func @transform_3(%arg0: i32) -> (i32, i32, i32) {
    %c0_i32 = arith.constant 0 : i32
    %c0_i32_0 = arith.constant 0 : i32
    %c0_i32_1 = arith.constant 0 : i32
    return %arg0, %c0_i32, %c0_i32_0 : i32, i32, i32
  }
  func.func @transform_4(%arg0: i32) -> (i32, i32, i32) {
    %c0_i32 = arith.constant 0 : i32
    %c0_i32_0 = arith.constant 0 : i32
    %c0_i32_1 = arith.constant 0 : i32
    return %arg0, %c0_i32, %c0_i32_0 : i32, i32, i32
  }
}

</mosaic_0001>

<llo_original>
// kernel: _prob_attention_impl.2
$region0: #{_prob_attention_impl.2}
  #allocation0 [shape = 'u32[]', space=smem, size = 0x4, offset = 0x4, fixed_abs, tag = 'smem constant byte address 0x4 - core index']
  #allocation1 [shape = 'u32[72,128]{1,0:T(1,128)}', space=vmem, size = 0x9000, scoped, tag = 'internal scratch']
  %s0 = inlined_call_operand.vmem [shape: bf16[64,64], index: 0, kind: input, shape index: {}]
  %s1 = inlined_call_operand.vmem [shape: bf16[8,64,32], index: 1, kind: input, shape index: {}]
  %s2 = inlined_call_operand.vmem [shape: bf16[8,64,32], index: 2, kind: input, shape index: {}]
  %s3 = inlined_call_operand.vmem [shape: f32[8,1,64], index: 3, kind: output, shape index: {}]
  %s4 = sld [smem:[#allocation0]]
  $region45: #{_prob_attention_impl.2} parent=0
    _
  %s6 = ssub.s32 1, %s4
  %s7 = scalar_select 0, %s6, %s4
  loop: start=0, step=1, limit=10
  $region2: #{_prob_attention_impl.2} parent=0 // loop_pre_header
    _
  $region3: #{_prob_attention_impl.2} parent=0 // loop_header
    %s9 = sphi 0, %s13
    %p10 = scmp.ge.s32.totalorder %s9, 10
    %s16 = sphi 0, %s28
    %s17 = sphi 0, %s24
    %s18 = sphi 0, %s16
    %s19 = sphi 0, %s17
    %s20 = sphi 0, %s18
    %s21 = sphi 0, %s19
    %s31 = sphi 0, %s33
    %s34 = sphi 0, %s31
    %s35 = sphi 0, %s34
    %s51 = sphi 0, %s35
    %s59 = sphi 0, %s61
    %s62 = sphi 0, %s59
    %s63 = sphi 0, %s62
    %s79 = sphi 0, %s63
    %s85 = sphi 0, %s87
    %s88 = sphi 0, %s85
    %s89 = sphi 0, %s88
    %s105 = sphi 0, %s89
    %s113 = sphi 0, %s115
    %s116 = sphi 0, %s113
    %s117 = sphi 0, %s116
    %s133 = sphi 0, %s117
  $region4: #{_prob_attention_impl.2} parent=0 // loop_header_branch
    %12 = sbr.rel (%p10) target = $region8
  $region5: #{_prob_attention_impl.2} parent=0 // loop_body
    %s14 = ssub.s32 %s9, 1
    %s15 = ssub.s32 %s9, 2
    %s22 = sadd.s32 1, %s17
    %p23 = scmp.ge.s32.totalorder %s22, 8
    %s24 = scalar_select %p23, 0, %s22
    %s25 = sadd.s32 1, %s16
    %s26 = scalar_select %p23, %s25, %s16
    %p27 = scmp.ge.s32.totalorder %s26, 1
    %s28 = scalar_select %p27, 0, %s26
    %s29 = ssub.s32 %s16, %s28
    %p30 = scmp.eq.s32.totalorder %s29, 0
    %s32 = sadd.s32 %s31, 1
    %s33 = scalar_select %p30, %s31, %s32
    %p36 = pneg %p30
    %p37 = scmp.eq.s32.totalorder %s9, 7
    %p38 = por %p36, %p37
    %p39 = scmp.ne.s32.totalorder %s31, %s34
    %p40 = scmp.eq.s32.totalorder %s9, 0
    %p41 = por %p39, %p40
    %p42 = scmp.ne.s32.totalorder %s31, %s34
    %p43 = scmp.eq.s32.totalorder %s14, 7
    %p44 = por %p42, %p43
    %p45 = scmp.ne.s32.totalorder %s34, %s35
    %p46 = scmp.eq.s32.totalorder %s14, 0
    %p47 = por %p45, %p46
    %p48 = scmp.ne.s32.totalorder %s34, %s35
    %p49 = scmp.eq.s32.totalorder %s15, 7
    %p50 = por %p48, %p49
    %p52 = scmp.ne.s32.totalorder %s35, %s51
    %p53 = scmp.eq.s32.totalorder %s15, 0
    %p54 = por %p52, %p53
    %s55 = ssub.s32 %s17, %s24
    %s56 = ssub.s32 %s16, %s28
    %s57 = sor.u32 %s55, %s56
    %p58 = scmp.eq.s32.totalorder %s57, 0
    %s60 = sadd.s32 %s59, 1
    %s61 = scalar_select %p58, %s59, %s60
    %p64 = pneg %p58
    %p65 = scmp.eq.s32.totalorder %s9, 7
    %p66 = por %p64, %p65
    %p67 = scmp.ne.s32.totalorder %s59, %s62
    %p68 = scmp.eq.s32.totalorder %s9, 0
    %p69 = por %p67, %p68
    %p70 = scmp.ne.s32.totalorder %s59, %s62
    %p71 = scmp.eq.s32.totalorder %s14, 7
    %p72 = por %p70, %p71
    %p73 = scmp.ne.s32.totalorder %s62, %s63
    %p74 = scmp.eq.s32.totalorder %s14, 0
    %p75 = por %p73, %p74
    %p76 = scmp.ne.s32.totalorder %s62, %s63
    %p77 = scmp.eq.s32.totalorder %s15, 7
    %p78 = por %p76, %p77
    %p80 = scmp.ne.s32.totalorder %s63, %s79
    %p81 = scmp.eq.s32.totalorder %s15, 0
    %p82 = por %p80, %p81
    %s83 = ssub.s32 %s17, %s24
    %p84 = scmp.eq.s32.totalorder %s83, 0
    %s86 = sadd.s32 %s85, 1
    %s87 = scalar_select %p84, %s85, %s86
    %p90 = pneg %p84
    %p91 = scmp.eq.s32.totalorder %s9, 7
    %p92 = por %p90, %p91
    %p93 = scmp.ne.s32.totalorder %s85, %s88
    %p94 = scmp.eq.s32.totalorder %s9, 0
    %p95 = por %p93, %p94
    %p96 = scmp.ne.s32.totalorder %s85, %s88
    %p97 = scmp.eq.s32.totalorder %s14, 7
    %p98 = por %p96, %p97
    %p99 = scmp.ne.s32.totalorder %s88, %s89
    %p100 = scmp.eq.s32.totalorder %s14, 0
    %p101 = por %p99, %p100
    %p102 = scmp.ne.s32.totalorder %s88, %s89
    %p103 = scmp.eq.s32.totalorder %s15, 7
    %p104 = por %p102, %p103
    %p106 = scmp.ne.s32.totalorder %s89, %s105
    %p107 = scmp.eq.s32.totalorder %s15, 0
    %p108 = por %p106, %p107
    %s109 = ssub.s32 %s17, %s24
    %s110 = ssub.s32 %s16, %s28
    %s111 = sor.u32 %s109, %s110
    %p112 = scmp.eq.s32.totalorder %s111, 0
    %s114 = sadd.s32 %s113, 1
    %s115 = scalar_select %p112, %s113, %s114
    %p118 = pneg %p112
    %p119 = scmp.eq.s32.totalorder %s9, 7
    %p120 = por %p118, %p119
    %p121 = scmp.ne.s32.totalorder %s113, %s116
    %p122 = scmp.eq.s32.totalorder %s9, 0
    %p123 = por %p121, %p122
    %p124 = scmp.ne.s32.totalorder %s113, %s116
    %p125 = scmp.eq.s32.totalorder %s14, 7
    %p126 = por %p124, %p125
    %p127 = scmp.ne.s32.totalorder %s116, %s117
    %p128 = scmp.eq.s32.totalorder %s14, 0
    %p129 = por %p127, %p128
    %p130 = scmp.ne.s32.totalorder %s116, %s117
    %p131 = scmp.eq.s32.totalorder %s15, 7
    %p132 = por %p130, %p131
    %p134 = scmp.ne.s32.totalorder %s117, %s133
    %p135 = scmp.eq.s32.totalorder %s15, 0
    %p136 = por %p134, %p135
    %p137 = scmp.le.s32.totalorder 1, %s9
    %p138 = scmp.lt.s32.totalorder %s9, 9
    %p139 = pnand %p137, %p138
    %p140 = pneg %p139
    // Predicated region
    $region9: #{_prob_attention_impl.2} parent=5 // pred_check
      _
    $region10: #{_prob_attention_impl.2} parent=5 // pred_check_branch
      %142 = sbr.rel (%p139) target = $region12
    $region11: #{_prob_attention_impl.2} parent=5 // pred_region
      %s143 = ssub.s32 %s9, 1
      // Predicated region
      $region13: #{_prob_attention_impl.2} parent=11 // pred_check
        %p144 = pneg %p47
      $region14: #{_prob_attention_impl.2} parent=11 // pred_check_branch
        %146 = sbr.rel (%p144) target = $region16
      $region15: #{_prob_attention_impl.2} parent=11 // pred_region
        %s147 = smul.u32 8, %s18
        %p148 = scmp.lt.s32.totalorder %s147, 7
        %s149 = scalar_select %p148, %s147, 7
        %s150 = smul.addr %s149, 4
        %s151 = scalar_lea.vmem %s0, %s150
        %s152 = smul.u32 8, %s18
      $region16: #{_prob_attention_impl.2} parent=11 // pred_fallthru
        _
    $region12: #{_prob_attention_impl.2} parent=5 // pred_fallthru
      _
    %p153 = scmp.lt.s32.totalorder %s9, 8
    // Predicated region
    $region17: #{_prob_attention_impl.2} parent=5 // pred_check
      %p154 = pneg %p153
    $region18: #{_prob_attention_impl.2} parent=5 // pred_check_branch
      %156 = sbr.rel (%p154) target = $region20
    $region19: #{_prob_attention_impl.2} parent=5 // pred_region
      // Predicated region
      $region21: #{_prob_attention_impl.2} parent=19 // pred_check
        %p157 = pneg %p69
      $region22: #{_prob_attention_impl.2} parent=19 // pred_check_branch
        %159 = sbr.rel (%p157) target = $region24
      $region23: #{_prob_attention_impl.2} parent=19 // pred_region
        %s160 = smul.u32 8, %s16
        %p161 = scmp.lt.s32.totalorder %s17, 7
        %s162 = scalar_select %p161, %s17, 7
        %p163 = scmp.lt.s32.totalorder %s160, 7
        %s164 = scalar_select %p163, %s160, 7
        %s165 = smul.addr %s162, 8
        %s166 = sadd.s32 %s164, %s165
        %s167 = smul.addr %s166, 4
        %s168 = scalar_lea.vmem %s1, %s167
        %s169 = smul.u32 8, %s16
      $region24: #{_prob_attention_impl.2} parent=19 // pred_fallthru
        _
      // Predicated region
      $region25: #{_prob_attention_impl.2} parent=19 // pred_check
        %p170 = pneg %p95
      $region26: #{_prob_attention_impl.2} parent=19 // pred_check_branch
        %172 = sbr.rel (%p170) target = $region28
      $region27: #{_prob_attention_impl.2} parent=19 // pred_region
        %p173 = scmp.lt.s32.totalorder %s17, 7
        %s174 = scalar_select %p173, %s17, 7
        %s175 = smul.addr %s174, 8
        %s176 = smul.addr %s175, 4
        %s177 = scalar_lea.vmem %s2, %s176
      $region28: #{_prob_attention_impl.2} parent=19 // pred_fallthru
        _
    $region20: #{_prob_attention_impl.2} parent=5 // pred_fallthru
      _
    %p178 = scmp.le.s32.totalorder 1, %s9
    %p179 = scmp.lt.s32.totalorder %s9, 9
    %p180 = pnand %p178, %p179
    %p181 = pneg %p180
    // Predicated region
    $region29: #{_prob_attention_impl.2} parent=5 // pred_check
      _
    $region30: #{_prob_attention_impl.2} parent=5 // pred_check_branch
      %183 = sbr.rel (%p180) target = $region32
    $region31: #{_prob_attention_impl.2} parent=5 // pred_region
      %s184 = ssub.s32 %s9, 1
      %s185 = smul.u32 8, %s18
      %p186 = scmp.lt.s32.totalorder %s185, 7
      %s187 = scalar_select %p186, %s185, 7
      %s188 = smul.addr %s187, 4
      %s189 = scalar_lea.vmem %s0, %s188
      %p190 = pneg %p47
      %p191 = pneg %p44
      %s192 = smul.u32 8, %s18
      %p193 = scmp.lt.s32.totalorder %s19, 7
      %s194 = scalar_select %p193, %s19, 7
      %p195 = scmp.lt.s32.totalorder %s192, 7
      %s196 = scalar_select %p195, %s192, 7
      %s197 = smul.addr %s194, 8
      %s198 = sadd.s32 %s196, %s197
      %s199 = smul.addr %s198, 4
      %s200 = scalar_lea.vmem %s1, %s199
      %p201 = pneg %p75
      %p202 = pneg %p72
      %p203 = scmp.lt.s32.totalorder %s19, 7
      %s204 = scalar_select %p203, %s19, 7
      %s205 = smul.addr %s204, 8
      %s206 = smul.addr %s205, 4
      %s207 = scalar_lea.vmem %s2, %s206
      %p208 = pneg %p101
      %p209 = pneg %p98
      %p210 = pneg %p129
      %p211 = pneg %p126
      %p212 = scmp.lt.s32.totalorder %s19, 7
      %s213 = scalar_select %p212, %s19, 7
      %p214 = scmp.lt.s32.totalorder %s18, 0
      %s215 = scalar_select %p214, %s18, 0
      %s216 = sadd.s32 %s215, %s213
      %s217 = scalar_lea.vmem %s3, %s216
      %s218 = smul.u32 8, %s18
      %p219 = scmp.lt.s32.totalorder %s218, 7
      %s220 = scalar_select %p219, %s218, 7
      %s221 = smul.addr %s220, 4
      %s222 = scalar_lea.vmem %s0, %s221
      %s223 = smul.u32 8, %s18
      %s224 = smul.u32 8, %s18
      %p225 = scmp.lt.s32.totalorder %s19, 7
      %s226 = scalar_select %p225, %s19, 7
      %p227 = scmp.lt.s32.totalorder %s224, 7
      %s228 = scalar_select %p227, %s224, 7
      %s229 = smul.addr %s226, 8
      %s230 = sadd.s32 %s228, %s229
      %s231 = smul.addr %s230, 4
      %s232 = scalar_lea.vmem %s1, %s231
      %s233 = smul.u32 8, %s18
      %p234 = scmp.lt.s32.totalorder %s19, 7
      %s235 = scalar_select %p234, %s19, 7
      %s236 = smul.addr %s235, 8
      %s237 = smul.addr %s236, 4
      %s238 = scalar_lea.vmem %s2, %s237
      %p239 = scmp.lt.s32.totalorder %s19, 7
      %s240 = scalar_select %p239, %s19, 7
      %p241 = scmp.lt.s32.totalorder %s18, 0
      %s242 = scalar_select %p241, %s18, 0
      %s243 = sadd.s32 %s242, %s240
      %s244 = scalar_lea.vmem %s3, %s243
      %v246 = vld [vmem:[%s232] sm:$0xf]
      %v247 = vld [vmem:[%s232 + $0x4] sm:$0xf]
      %v248 = vld [vmem:[%s232 + $0x8] sm:$0xf]
      %v249 = vld [vmem:[%s232 + $0xc] sm:$0xf]
      %v250 = vld [vmem:[%s232 + $0x10] sm:$0xf]
      %v251 = vld [vmem:[%s232 + $0x14] sm:$0xf]
      %v252 = vld [vmem:[%s232 + $0x18] sm:$0xf]
      %v253 = vld [vmem:[%s232 + $0x1c] sm:$0xf]
      %v254 = vld [vmem:[%s238] sm:$0xf]
      %v255 = vld [vmem:[%s238 + $0x4] sm:$0xf]
      %v256 = vld [vmem:[%s238 + $0x8] sm:$0xf]
      %v257 = vld [vmem:[%s238 + $0xc] sm:$0xf]
      %v258 = vld [vmem:[%s238 + $0x10] sm:$0xf]
      %v259 = vld [vmem:[%s238 + $0x14] sm:$0xf]
      %v260 = vld [vmem:[%s238 + $0x18] sm:$0xf]
      %v261 = vld [vmem:[%s238 + $0x1c] sm:$0xf]
      %v262 = vld [vmem:[%s222] sm:$0xf]
      %v263 = vld [vmem:[%s222 + $0x4] sm:$0xf]
      %v264 = vld [vmem:[%s222 + $0x8] sm:$0xf]
      %v265 = vld [vmem:[%s222 + $0xc] sm:$0xf]
      %v266 = vld [vmem:[%s222 + $0x10] sm:$0xf]
      %v267 = vld [vmem:[%s222 + $0x14] sm:$0xf]
      %v268 = vld [vmem:[%s222 + $0x18] sm:$0xf]
      %v269 = vld [vmem:[%s222 + $0x1c] sm:$0xf]
      %v278 = vunpack.c.l.b16 %v246
      %v279 = vunpack.c.l.b16 %v247
      %v280 = vunpack.c.l.b16 %v248
      %v281 = vunpack.c.l.b16 %v249
      %v282 = vunpack.c.l.b16 %v250
      %v283 = vunpack.c.l.b16 %v251
      %v284 = vunpack.c.l.b16 %v252
      %v285 = vunpack.c.l.b16 %v253
      %v286 = vpack.c.b16 %v279, %v278
      %v287 = vpack.c.b16 %v281, %v280
      %v288 = vpack.c.b16 %v283, %v282
      %v289 = vpack.c.b16 %v285, %v284
      %v298 = vunpack.c.l.b16 %v254
      %v299 = vunpack.c.l.b16 %v255
      %v300 = vunpack.c.l.b16 %v256
      %v301 = vunpack.c.l.b16 %v257
      %v302 = vunpack.c.l.b16 %v258
      %v303 = vunpack.c.l.b16 %v259
      %v304 = vunpack.c.l.b16 %v260
      %v305 = vunpack.c.l.b16 %v261
      %v306 = vpack.c.b16 %v299, %v298
      %v307 = vpack.c.b16 %v301, %v300
      %v308 = vpack.c.b16 %v303, %v302
      %v309 = vpack.c.b16 %v305, %v304
      %vm310 = vcmask 261120
      %v312 = vsel %vm310, %v286, 0
      %v315 = vsel %vm310, %v287, 0
      %v318 = vsel %vm310, %v288, 0
      %v321 = vsel %vm310, %v289, 0
      %v324 = vsel %vm310, %v306, 0
      %v327 = vsel %vm310, %v307, 0
      %v330 = vsel %vm310, %v308, 0
      %v333 = vsel %vm310, %v309, 0
      %335 = vmatpush.bf16.xpose.msra.mxu0 0
      %336 = vmatpush.bf16.xpose.msra.mxu0 0
      %337 = vmatpush.bf16.xpose.msra.mxu0 0
      %338 = vmatpush.bf16.xpose.msra.mxu0 0
      %339 = vmatpush.bf16.xpose.msra.mxu0 %v333
      %340 = vmatpush.bf16.xpose.msra.mxu0 %v330
      %341 = vmatpush.bf16.xpose.msra.mxu0 %v327
      %342 = vmatpush.bf16.xpose.msra.mxu0 %v324
      %343 = vmatmul.bf16.gmra.mxu0 %v312
      %v344 = vpop.f32.mrf.mxu0
      %v345 = vadd.f32 0.0, %v344
      %v346 = vpop.f32.mrf.mxu0
      %v347 = vadd.f32 0.0, %v346
      %348 = vmatmul.bf16.gmra.mxu0 %v315
      %v349 = vpop.f32.mrf.mxu0
      %v350 = vadd.f32 0.0, %v349
      %v351 = vpop.f32.mrf.mxu0
      %v352 = vadd.f32 0.0, %v351
      %353 = vmatmul.bf16.gmra.mxu0 %v318
      %v354 = vpop.f32.mrf.mxu0
      %v355 = vadd.f32 0.0, %v354
      %v356 = vpop.f32.mrf.mxu0
      %v357 = vadd.f32 0.0, %v356
      %358 = vmatmul.bf16.gmra.mxu0 %v321
      %v359 = vpop.f32.mrf.mxu0
      %v360 = vadd.f32 0.0, %v359
      %v361 = vpop.f32.mrf.mxu0
      %v362 = vadd.f32 0.0, %v361
      %363 = vdwg.mxu0
      %v364 = vunpack.c.l.bf16 %v262
      %v365 = vunpack.c.l.bf16 %v263
      %v366 = vunpack.c.l.bf16 %v264
      %v367 = vunpack.c.l.bf16 %v265
      %v368 = vunpack.c.l.bf16 %v266
      %v369 = vunpack.c.l.bf16 %v267
      %v370 = vunpack.c.l.bf16 %v268
      %v371 = vunpack.c.l.bf16 %v269
      %vm372 = vcmp.gt.f32.partialorder %v364, 0.0
      %vm373 = vcmp.gt.f32.partialorder %v365, 0.0
      %vm374 = vcmp.gt.f32.partialorder %v366, 0.0
      %vm375 = vcmp.gt.f32.partialorder %v367, 0.0
      %vm376 = vcmp.gt.f32.partialorder %v368, 0.0
      %vm377 = vcmp.gt.f32.partialorder %v369, 0.0
      %vm378 = vcmp.gt.f32.partialorder %v370, 0.0
      %vm379 = vcmp.gt.f32.partialorder %v371, 0.0
      %v380 = vsel %vm372, %v345, -inf
      %v381 = vsel %vm373, %v347, -inf
      %v382 = vsel %vm374, %v350, -inf
      %v383 = vsel %vm375, %v352, -inf
      %v384 = vsel %vm376, %v355, -inf
      %v385 = vsel %vm377, %v357, -inf
      %v386 = vsel %vm378, %v360, -inf
      %v387 = vsel %vm379, %v362, -inf
      %vm388 = vcmask 523264
      %v389 = vsel %vm388, %v380, -inf
      %390 = vmax.xlane.f32.xlu0 %v389
      %v391 = vpop.xlane.xlu0 %390
      %v392 = vsel %vm388, %v381, -inf
      %393 = vmax.xlane.f32.xlu0 %v392
      %v394 = vpop.xlane.xlu0 %393
      %v395 = vsel %vm388, %v382, -inf
      %396 = vmax.xlane.f32.xlu0 %v395
      %v397 = vpop.xlane.xlu0 %396
      %v398 = vsel %vm388, %v383, -inf
      %399 = vmax.xlane.f32.xlu0 %v398
      %v400 = vpop.xlane.xlu0 %399
      %v401 = vsel %vm388, %v384, -inf
      %402 = vmax.xlane.f32.xlu0 %v401
      %v403 = vpop.xlane.xlu0 %402
      %v404 = vsel %vm388, %v385, -inf
      %405 = vmax.xlane.f32.xlu0 %v404
      %v406 = vpop.xlane.xlu0 %405
      %v407 = vsel %vm388, %v386, -inf
      %408 = vmax.xlane.f32.xlu0 %v407
      %v409 = vpop.xlane.xlu0 %408
      %v410 = vsel %vm388, %v387, -inf
      %411 = vmax.xlane.f32.xlu0 %v410
      %v412 = vpop.xlane.xlu0 %411
      %v421 = vunpack.c.l.b16 %v262
      %v422 = vunpack.c.l.b16 %v263
      %v423 = vunpack.c.l.b16 %v264
      %v424 = vunpack.c.l.b16 %v265
      %v425 = vunpack.c.l.b16 %v266
      %v426 = vunpack.c.l.b16 %v267
      %v427 = vunpack.c.l.b16 %v268
      %v428 = vunpack.c.l.b16 %v269
      %v429 = vpack.c.b16 %v422, %v421
      %v430 = vpack.c.b16 %v424, %v423
      %v431 = vpack.c.b16 %v426, %v425
      %v432 = vpack.c.b16 %v428, %v427
      %v438 = vsel %vm388, %v429, 0
      %v441 = vsel %vm388, %v430, 0
      %v444 = vsel %vm388, %v431, 0
      %v447 = vsel %vm388, %v432, 0
      %449 = vmatpush.bf16.msra.mxu0 0
      %450 = vmatpush.bf16.msra.mxu0 0
      %451 = vmatpush.bf16.msra.mxu0 0
      %452 = vmatpush.bf16.msra.mxu0 0
      %453 = vmatpush.bf16.msra.mxu0 %v309
      %454 = vmatpush.bf16.msra.mxu0 %v308
      %455 = vmatpush.bf16.msra.mxu0 %v307
      %456 = vmatpush.bf16.msra.mxu0 %v306
      %457 = vmatmul.bf16.gmra.mxu0 %v438
      %v458 = vpop.f32.mrf.mxu0
      %v459 = vadd.f32 0.0, %v458
      %v460 = vpop.f32.mrf.mxu0
      %v461 = vadd.f32 0.0, %v460
      %462 = vmatmul.bf16.gmra.mxu0 %v441
      %v463 = vpop.f32.mrf.mxu0
      %v464 = vadd.f32 0.0, %v463
      %v465 = vpop.f32.mrf.mxu0
      %v466 = vadd.f32 0.0, %v465
      %467 = vmatmul.bf16.gmra.mxu0 %v444
      %v468 = vpop.f32.mrf.mxu0
      %v469 = vadd.f32 0.0, %v468
      %v470 = vpop.f32.mrf.mxu0
      %v471 = vadd.f32 0.0, %v470
      %472 = vmatmul.bf16.gmra.mxu0 %v447
      %v473 = vpop.f32.mrf.mxu0
      %v474 = vadd.f32 0.0, %v473
      %v475 = vpop.f32.mrf.mxu0
      %v476 = vadd.f32 0.0, %v475
      %477 = vdwg.mxu0
      %v478 = vunpack.c.l.bf16 %v246
      %v479 = vunpack.c.l.bf16 %v247
      %v480 = vunpack.c.l.bf16 %v248
      %v481 = vunpack.c.l.bf16 %v249
      %v482 = vunpack.c.l.bf16 %v250
      %v483 = vunpack.c.l.bf16 %v251
      %v484 = vunpack.c.l.bf16 %v252
      %v485 = vunpack.c.l.bf16 %v253
      %v486 = vmul.f32 %v478, %v459
      %v487 = vmul.f32 %v479, %v461
      %v488 = vmul.f32 %v480, %v464
      %v489 = vmul.f32 %v481, %v466
      %v490 = vmul.f32 %v482, %v469
      %v491 = vmul.f32 %v483, %v471
      %v492 = vmul.f32 %v484, %v474
      %v493 = vmul.f32 %v485, %v476
      %v494 = vsel %vm310, %v486, 0.0
      %495 = vadd.xlane.f32.xlu0 %v494
      %v496 = vpop.xlane.xlu0 %495
      %v497 = vsel %vm310, %v487, 0.0
      %498 = vadd.xlane.f32.xlu0 %v497
      %v499 = vpop.xlane.xlu0 %498
      %v500 = vsel %vm310, %v488, 0.0
      %501 = vadd.xlane.f32.xlu0 %v500
      %v502 = vpop.xlane.xlu0 %501
      %v503 = vsel %vm310, %v489, 0.0
      %504 = vadd.xlane.f32.xlu0 %v503
      %v505 = vpop.xlane.xlu0 %504
      %v506 = vsel %vm310, %v490, 0.0
      %507 = vadd.xlane.f32.xlu0 %v506
      %v508 = vpop.xlane.xlu0 %507
      %v509 = vsel %vm310, %v491, 0.0
      %510 = vadd.xlane.f32.xlu0 %v509
      %v511 = vpop.xlane.xlu0 %510
      %v512 = vsel %vm310, %v492, 0.0
      %513 = vadd.xlane.f32.xlu0 %v512
      %v514 = vpop.xlane.xlu0 %513
      %v515 = vsel %vm310, %v493, 0.0
      %516 = vadd.xlane.f32.xlu0 %v515
      %v517 = vpop.xlane.xlu0 %516
      %v518 = vmul.f32 %v496, 0.015625
      %v519 = vmul.f32 %v499, 0.015625
      %v520 = vmul.f32 %v502, 0.015625
      %v521 = vmul.f32 %v505, 0.015625
      %v522 = vmul.f32 %v508, 0.015625
      %v523 = vmul.f32 %v511, 0.015625
      %v524 = vmul.f32 %v514, 0.015625
      %v525 = vmul.f32 %v517, 0.015625
      %v526 = vsub.f32 %v391, %v518
      %v527 = vsub.f32 %v394, %v519
      %v528 = vsub.f32 %v397, %v520
      %v529 = vsub.f32 %v400, %v521
      %v530 = vsub.f32 %v403, %v522
      %v531 = vsub.f32 %v406, %v523
      %v532 = vsub.f32 %v409, %v524
      %v533 = vsub.f32 %v412, %v525
      %v542 = vlaneseq
      %v543 = vand.u32 %v542, 127
      %v544 = vperm.slane %v526, %v543
      %v545 = vadd.s32 %v543, 4294967288
      %v546 = vperm.slane %v527, %v545
      %vm547 = vcmask 130112
      %v548 = vsel %vm547, %v546, %v544
      %v549 = vadd.s32 %v543, 4294967280
      %v550 = vperm.slane %v528, %v549
      %vm551 = vcmask 195712
      %v552 = vsel %vm551, %v550, %v548
      %v553 = vadd.s32 %v543, 4294967272
      %v554 = vperm.slane %v529, %v553
      %vm555 = vcmask 261312
      %v556 = vsel %vm555, %v554, %v552
      %v557 = vadd.s32 %v543, 4294967264
      %v558 = vperm.slane %v530, %v557
      %vm559 = vcmask 326912
      %v560 = vsel %vm559, %v558, %v556
      %v561 = vadd.s32 %v543, 4294967256
      %v562 = vperm.slane %v531, %v561
      %vm563 = vcmask 392512
      %v564 = vsel %vm563, %v562, %v560
      %v565 = vadd.s32 %v543, 4294967248
      %v566 = vperm.slane %v532, %v565
      %vm567 = vcmask 458112
      %v568 = vsel %vm567, %v566, %v564
      %v569 = vadd.s32 %v543, 4294967240
      %v570 = vperm.slane %v533, %v569
      %vm571 = vcmask 523712
      %v572 = vsel %vm571, %v570, %v568
      %vm574 = vcmask 516096
      %575 = vst.msk [vmem:[%s244] sm:$0x1] %vm574, %v572
      %p576 = scmp.lt.s32.totalorder %s19, 7
      %s577 = scalar_select %p576, %s19, 7
      %p578 = scmp.lt.s32.totalorder %s18, 0
      %s579 = scalar_select %p578, %s18, 0
      %s580 = sadd.s32 %s579, %s577
      %s581 = scalar_lea.vmem %s3, %s580
      // Predicated region
      $region33: #{_prob_attention_impl.2} parent=31 // pred_check
        %p582 = pneg %p126
      $region34: #{_prob_attention_impl.2} parent=31 // pred_check_branch
        %584 = sbr.rel (%p582) target = $region36
      $region35: #{_prob_attention_impl.2} parent=31 // pred_region
        _
      $region36: #{_prob_attention_impl.2} parent=31 // pred_fallthru
        _
    $region32: #{_prob_attention_impl.2} parent=5 // pred_fallthru
      _
    %p585 = scmp.le.s32.totalorder 2, %s9
    // Predicated region
    $region37: #{_prob_attention_impl.2} parent=5 // pred_check
      %p586 = pneg %p585
    $region38: #{_prob_attention_impl.2} parent=5 // pred_check_branch
      %588 = sbr.rel (%p586) target = $region40
    $region39: #{_prob_attention_impl.2} parent=5 // pred_region
      %s589 = ssub.s32 %s9, 2
      // Predicated region
      $region41: #{_prob_attention_impl.2} parent=39 // pred_check
        %p590 = pneg %p132
      $region42: #{_prob_attention_impl.2} parent=39 // pred_check_branch
        %592 = sbr.rel (%p590) target = $region44
      $region43: #{_prob_attention_impl.2} parent=39 // pred_region
        %p593 = scmp.lt.s32.totalorder %s21, 7
        %s594 = scalar_select %p593, %s21, 7
        %p595 = scmp.lt.s32.totalorder %s20, 0
        %s596 = scalar_select %p595, %s20, 0
        %s597 = sadd.s32 %s596, %s594
        %s598 = scalar_lea.vmem %s3, %s597
      $region44: #{_prob_attention_impl.2} parent=39 // pred_fallthru
        _
    $region40: #{_prob_attention_impl.2} parent=5 // pred_fallthru
      _
  $region6: #{_prob_attention_impl.2} parent=0 // loop_footer
    %s13 = sadd.s32 1, %s9
  $region7: #{_prob_attention_impl.2} parent=0 // loop_footer_branch
    %8 = sbr.rel target = $region3
  $region8: #{_prob_attention_impl.2} parent=0 // loop_exit
    _

// kernel: _prob_attention_impl.3
$region0: #{_prob_attention_impl.3}
  #allocation0 [shape = 'u32[]', space=smem, size = 0x4, offset = 0x4, fixed_abs, tag = 'smem constant byte address 0x4 - core index']
  #allocation1 [shape = 'u32[72,128]{1,0:T(1,128)}', space=vmem, size = 0x9000, scoped, tag = 'internal scratch']
  %s0 = inlined_call_operand.vmem [shape: s32[8,32,1], index: 0, kind: input, shape index: {}]
  %s1 = inlined_call_operand.vmem [shape: bf16[8,32,32], index: 1, kind: input, shape index: {}]
  %s2 = inlined_call_operand.vmem [shape: bf16[8,64,32], index: 2, kind: input, shape index: {}]
  %s3 = inlined_call_operand.vmem [shape: bf16[8,64,32], index: 3, kind: input, shape index: {}]
  %s4 = inlined_call_operand.vmem [shape: f32[8,32,32], index: 4, kind: output, shape index: {}]
  %s5 = sld [smem:[#allocation0]]
  $region49: #{_prob_attention_impl.3} parent=0
    _
  %s7 = ssub.s32 1, %s5
  %s8 = scalar_select 0, %s7, %s5
  loop: start=0, step=1, limit=10
  $region2: #{_prob_attention_impl.3} parent=0 // loop_pre_header
    _
  $region3: #{_prob_attention_impl.3} parent=0 // loop_header
    %s10 = sphi 0, %s14
    %p11 = scmp.ge.s32.totalorder %s10, 10
    %s20 = sphi 0, %s22
    %s23 = sphi 0, %s20
    %s24 = sphi 0, %s23
    %s40 = sphi 0, %s24
    %s46 = sphi 0, %s48
    %s49 = sphi 0, %s46
    %s50 = sphi 0, %s49
    %s66 = sphi 0, %s50
    %s72 = sphi 0, %s74
    %s75 = sphi 0, %s72
    %s76 = sphi 0, %s75
    %s92 = sphi 0, %s76
    %s98 = sphi 0, %s100
    %s101 = sphi 0, %s98
    %s102 = sphi 0, %s101
    %s118 = sphi 0, %s102
    %s124 = sphi 0, %s126
    %s127 = sphi 0, %s124
    %s128 = sphi 0, %s127
    %s144 = sphi 0, %s128
  $region4: #{_prob_attention_impl.3} parent=0 // loop_header_branch
    %13 = sbr.rel (%p11) target = $region8
  $region5: #{_prob_attention_impl.3} parent=0 // loop_body
    %s15 = ssub.s32 %s10, 1
    %s16 = ssub.s32 %s10, 2
    %s17 = sadd.s32 %s10, 1
    %s18 = ssub.s32 %s10, %s17
    %p19 = scmp.eq.s32.totalorder %s18, 0
    %s21 = sadd.s32 %s20, 1
    %s22 = scalar_select %p19, %s20, %s21
    %p25 = pneg %p19
    %p26 = scmp.eq.s32.totalorder %s10, 7
    %p27 = por %p25, %p26
    %p28 = scmp.ne.s32.totalorder %s20, %s23
    %p29 = scmp.eq.s32.totalorder %s10, 0
    %p30 = por %p28, %p29
    %p31 = scmp.ne.s32.totalorder %s20, %s23
    %p32 = scmp.eq.s32.totalorder %s15, 7
    %p33 = por %p31, %p32
    %p34 = scmp.ne.s32.totalorder %s23, %s24
    %p35 = scmp.eq.s32.totalorder %s15, 0
    %p36 = por %p34, %p35
    %p37 = scmp.ne.s32.totalorder %s23, %s24
    %p38 = scmp.eq.s32.totalorder %s16, 7
    %p39 = por %p37, %p38
    %p41 = scmp.ne.s32.totalorder %s24, %s40
    %p42 = scmp.eq.s32.totalorder %s16, 0
    %p43 = por %p41, %p42
    %s44 = ssub.s32 %s10, %s17
    %p45 = scmp.eq.s32.totalorder %s44, 0
    %s47 = sadd.s32 %s46, 1
    %s48 = scalar_select %p45, %s46, %s47
    %p51 = pneg %p45
    %p52 = scmp.eq.s32.totalorder %s10, 7
    %p53 = por %p51, %p52
    %p54 = scmp.ne.s32.totalorder %s46, %s49
    %p55 = scmp.eq.s32.totalorder %s10, 0
    %p56 = por %p54, %p55
    %p57 = scmp.ne.s32.totalorder %s46, %s49
    %p58 = scmp.eq.s32.totalorder %s15, 7
    %p59 = por %p57, %p58
    %p60 = scmp.ne.s32.totalorder %s49, %s50
    %p61 = scmp.eq.s32.totalorder %s15, 0
    %p62 = por %p60, %p61
    %p63 = scmp.ne.s32.totalorder %s49, %s50
    %p64 = scmp.eq.s32.totalorder %s16, 7
    %p65 = por %p63, %p64
    %p67 = scmp.ne.s32.totalorder %s50, %s66
    %p68 = scmp.eq.s32.totalorder %s16, 0
    %p69 = por %p67, %p68
    %s70 = ssub.s32 %s10, %s17
    %p71 = scmp.eq.s32.totalorder %s70, 0
    %s73 = sadd.s32 %s72, 1
    %s74 = scalar_select %p71, %s72, %s73
    %p77 = pneg %p71
    %p78 = scmp.eq.s32.totalorder %s10, 7
    %p79 = por %p77, %p78
    %p80 = scmp.ne.s32.totalorder %s72, %s75
    %p81 = scmp.eq.s32.totalorder %s10, 0
    %p82 = por %p80, %p81
    %p83 = scmp.ne.s32.totalorder %s72, %s75
    %p84 = scmp.eq.s32.totalorder %s15, 7
    %p85 = por %p83, %p84
    %p86 = scmp.ne.s32.totalorder %s75, %s76
    %p87 = scmp.eq.s32.totalorder %s15, 0
    %p88 = por %p86, %p87
    %p89 = scmp.ne.s32.totalorder %s75, %s76
    %p90 = scmp.eq.s32.totalorder %s16, 7
    %p91 = por %p89, %p90
    %p93 = scmp.ne.s32.totalorder %s76, %s92
    %p94 = scmp.eq.s32.totalorder %s16, 0
    %p95 = por %p93, %p94
    %s96 = ssub.s32 %s10, %s17
    %p97 = scmp.eq.s32.totalorder %s96, 0
    %s99 = sadd.s32 %s98, 1
    %s100 = scalar_select %p97, %s98, %s99
    %p103 = pneg %p97
    %p104 = scmp.eq.s32.totalorder %s10, 7
    %p105 = por %p103, %p104
    %p106 = scmp.ne.s32.totalorder %s98, %s101
    %p107 = scmp.eq.s32.totalorder %s10, 0
    %p108 = por %p106, %p107
    %p109 = scmp.ne.s32.totalorder %s98, %s101
    %p110 = scmp.eq.s32.totalorder %s15, 7
    %p111 = por %p109, %p110
    %p112 = scmp.ne.s32.totalorder %s101, %s102
    %p113 = scmp.eq.s32.totalorder %s15, 0
    %p114 = por %p112, %p113
    %p115 = scmp.ne.s32.totalorder %s101, %s102
    %p116 = scmp.eq.s32.totalorder %s16, 7
    %p117 = por %p115, %p116
    %p119 = scmp.ne.s32.totalorder %s102, %s118
    %p120 = scmp.eq.s32.totalorder %s16, 0
    %p121 = por %p119, %p120
    %s122 = ssub.s32 %s10, %s17
    %p123 = scmp.eq.s32.totalorder %s122, 0
    %s125 = sadd.s32 %s124, 1
    %s126 = scalar_select %p123, %s124, %s125
    %p129 = pneg %p123
    %p130 = scmp.eq.s32.totalorder %s10, 7
    %p131 = por %p129, %p130
    %p132 = scmp.ne.s32.totalorder %s124, %s127
    %p133 = scmp.eq.s32.totalorder %s10, 0
    %p134 = por %p132, %p133
    %p135 = scmp.ne.s32.totalorder %s124, %s127
    %p136 = scmp.eq.s32.totalorder %s15, 7
    %p137 = por %p135, %p136
    %p138 = scmp.ne.s32.totalorder %s127, %s128
    %p139 = scmp.eq.s32.totalorder %s15, 0
    %p140 = por %p138, %p139
    %p141 = scmp.ne.s32.totalorder %s127, %s128
    %p142 = scmp.eq.s32.totalorder %s16, 7
    %p143 = por %p141, %p142
    %p145 = scmp.ne.s32.totalorder %s128, %s144
    %p146 = scmp.eq.s32.totalorder %s16, 0
    %p147 = por %p145, %p146
    %p148 = scmp.le.s32.totalorder 1, %s10
    %p149 = scmp.lt.s32.totalorder %s10, 9
    %p150 = pnand %p148, %p149
    %p151 = pneg %p150
    // Predicated region
    $region9: #{_prob_attention_impl.3} parent=5 // pred_check
      _
    $region10: #{_prob_attention_impl.3} parent=5 // pred_check_branch
      %153 = sbr.rel (%p150) target = $region12
    $region11: #{_prob_attention_impl.3} parent=5 // pred_region
      %s154 = ssub.s32 %s10, 1
    $region12: #{_prob_attention_impl.3} parent=5 // pred_fallthru
      _
    %p155 = scmp.lt.s32.totalorder %s10, 8
    // Predicated region
    $region13: #{_prob_attention_impl.3} parent=5 // pred_check
      %p156 = pneg %p155
    $region14: #{_prob_attention_impl.3} parent=5 // pred_check_branch
      %158 = sbr.rel (%p156) target = $region16
    $region15: #{_prob_attention_impl.3} parent=5 // pred_region
      // Predicated region
      $region17: #{_prob_attention_impl.3} parent=15 // pred_check
        %p159 = pneg %p30
      $region18: #{_prob_attention_impl.3} parent=15 // pred_check_branch
        %161 = sbr.rel (%p159) target = $region20
      $region19: #{_prob_attention_impl.3} parent=15 // pred_region
        %p162 = scmp.lt.s32.totalorder %s10, 7
        %s163 = scalar_select %p162, %s10, 7
        %s164 = smul.addr %s163, 4
        %s165 = smul.addr %s164, 8
        %s166 = scalar_lea.vmem %s0, %s165
      $region20: #{_prob_attention_impl.3} parent=15 // pred_fallthru
        _
      // Predicated region
      $region21: #{_prob_attention_impl.3} parent=15 // pred_check
        %p167 = pneg %p56
      $region22: #{_prob_attention_impl.3} parent=15 // pred_check_branch
        %169 = sbr.rel (%p167) target = $region24
      $region23: #{_prob_attention_impl.3} parent=15 // pred_region
        %p170 = scmp.lt.s32.totalorder %s10, 7
        %s171 = scalar_select %p170, %s10, 7
        %s172 = smul.addr %s171, 4
        %s173 = smul.addr %s172, 4
        %s174 = scalar_lea.vmem %s1, %s173
      $region24: #{_prob_attention_impl.3} parent=15 // pred_fallthru
        _
      // Predicated region
      $region25: #{_prob_attention_impl.3} parent=15 // pred_check
        %p175 = pneg %p82
      $region26: #{_prob_attention_impl.3} parent=15 // pred_check_branch
        %177 = sbr.rel (%p175) target = $region28
      $region27: #{_prob_attention_impl.3} parent=15 // pred_region
        %p178 = scmp.lt.s32.totalorder %s10, 7
        %s179 = scalar_select %p178, %s10, 7
        %s180 = smul.addr %s179, 8
        %s181 = smul.addr %s180, 4
        %s182 = scalar_lea.vmem %s2, %s181
      $region28: #{_prob_attention_impl.3} parent=15 // pred_fallthru
        _
      // Predicated region
      $region29: #{_prob_attention_impl.3} parent=15 // pred_check
        %p183 = pneg %p108
      $region30: #{_prob_attention_impl.3} parent=15 // pred_check_branch
        %185 = sbr.rel (%p183) target = $region32
      $region31: #{_prob_attention_impl.3} parent=15 // pred_region
        %p186 = scmp.lt.s32.totalorder %s10, 7
        %s187 = scalar_select %p186, %s10, 7
        %s188 = smul.addr %s187, 8
        %s189 = smul.addr %s188, 4
        %s190 = scalar_lea.vmem %s3, %s189
      $region32: #{_prob_attention_impl.3} parent=15 // pred_fallthru
        _
    $region16: #{_prob_attention_impl.3} parent=5 // pred_fallthru
      _
    %p191 = scmp.le.s32.totalorder 1, %s10
    %p192 = scmp.lt.s32.totalorder %s10, 9
    %p193 = pnand %p191, %p192
    %p194 = pneg %p193
    // Predicated region
    $region33: #{_prob_attention_impl.3} parent=5 // pred_check
      _
    $region34: #{_prob_attention_impl.3} parent=5 // pred_check_branch
      %196 = sbr.rel (%p193) target = $region36
    $region35: #{_prob_attention_impl.3} parent=5 // pred_region
      %s197 = ssub.s32 %s10, 1
      %p198 = scmp.lt.s32.totalorder %s15, 7
      %s199 = scalar_select %p198, %s15, 7
      %s200 = smul.addr %s199, 4
      %s201 = smul.addr %s200, 8
      %s202 = scalar_lea.vmem %s0, %s201
      %p203 = pneg %p36
      %p204 = pneg %p33
      %p205 = scmp.lt.s32.totalorder %s15, 7
      %s206 = scalar_select %p205, %s15, 7
      %s207 = smul.addr %s206, 4
      %s208 = smul.addr %s207, 4
      %s209 = scalar_lea.vmem %s1, %s208
      %p210 = pneg %p62
      %p211 = pneg %p59
      %p212 = scmp.lt.s32.totalorder %s15, 7
      %s213 = scalar_select %p212, %s15, 7
      %s214 = smul.addr %s213, 8
      %s215 = smul.addr %s214, 4
      %s216 = scalar_lea.vmem %s2, %s215
      %p217 = pneg %p88
      %p218 = pneg %p85
      %p219 = scmp.lt.s32.totalorder %s15, 7
      %s220 = scalar_select %p219, %s15, 7
      %s221 = smul.addr %s220, 8
      %s222 = smul.addr %s221, 4
      %s223 = scalar_lea.vmem %s3, %s222
      %p224 = pneg %p114
      %p225 = pneg %p111
      %p226 = pneg %p140
      %p227 = pneg %p137
      %p228 = scmp.lt.s32.totalorder %s15, 7
      %s229 = scalar_select %p228, %s15, 7
      %s230 = smul.addr %s229, 4
      %s231 = smul.addr %s230, 8
      %s232 = scalar_lea.vmem %s4, %s231
      %p233 = scmp.lt.s32.totalorder %s15, 7
      %s234 = scalar_select %p233, %s15, 7
      %s235 = smul.addr %s234, 4
      %s236 = smul.addr %s235, 8
      %s237 = scalar_lea.vmem %s0, %s236
      %p238 = scmp.lt.s32.totalorder %s15, 7
      %s239 = scalar_select %p238, %s15, 7
      %s240 = smul.addr %s239, 4
      %s241 = smul.addr %s240, 4
      %s242 = scalar_lea.vmem %s1, %s241
      %p243 = scmp.lt.s32.totalorder %s15, 7
      %s244 = scalar_select %p243, %s15, 7
      %s245 = smul.addr %s244, 8
      %s246 = smul.addr %s245, 4
      %s247 = scalar_lea.vmem %s2, %s246
      %p248 = scmp.lt.s32.totalorder %s15, 7
      %s249 = scalar_select %p248, %s15, 7
      %s250 = smul.addr %s249, 8
      %s251 = smul.addr %s250, 4
      %s252 = scalar_lea.vmem %s3, %s251
      %p253 = scmp.lt.s32.totalorder %s15, 7
      %s254 = scalar_select %p253, %s15, 7
      %s255 = smul.addr %s254, 4
      %s256 = smul.addr %s255, 8
      %s257 = scalar_lea.vmem %s4, %s256
      %v259 = vld [vmem:[%s242] sm:$0xf]
      %v260 = vld [vmem:[%s242 + $0x4] sm:$0xf]
      %v261 = vld [vmem:[%s242 + $0x8] sm:$0xf]
      %v262 = vld [vmem:[%s242 + $0xc] sm:$0xf]
      %v263 = vld [vmem:[%s247] sm:$0xf]
      %v264 = vld [vmem:[%s247 + $0x4] sm:$0xf]
      %v265 = vld [vmem:[%s247 + $0x8] sm:$0xf]
      %v266 = vld [vmem:[%s247 + $0xc] sm:$0xf]
      %v267 = vld [vmem:[%s247 + $0x10] sm:$0xf]
      %v268 = vld [vmem:[%s247 + $0x14] sm:$0xf]
      %v269 = vld [vmem:[%s247 + $0x18] sm:$0xf]
      %v270 = vld [vmem:[%s247 + $0x1c] sm:$0xf]
      %v271 = vld [vmem:[%s252] sm:$0xf]
      %v272 = vld [vmem:[%s252 + $0x4] sm:$0xf]
      %v273 = vld [vmem:[%s252 + $0x8] sm:$0xf]
      %v274 = vld [vmem:[%s252 + $0xc] sm:$0xf]
      %v275 = vld [vmem:[%s252 + $0x10] sm:$0xf]
      %v276 = vld [vmem:[%s252 + $0x14] sm:$0xf]
      %v277 = vld [vmem:[%s252 + $0x18] sm:$0xf]
      %v278 = vld [vmem:[%s252 + $0x1c] sm:$0xf]
      %v279 = vld [vmem:[%s237] sm:$0xff]
      %v280 = vld [vmem:[%s237 + $0x8] sm:$0xff]
      %v281 = vld [vmem:[%s237 + $0x10] sm:$0xff]
      %v282 = vld [vmem:[%s237 + $0x18] sm:$0xff]
      %v287 = vunpack.c.l.b16 %v259
      %v288 = vunpack.c.l.b16 %v260
      %v289 = vunpack.c.l.b16 %v261
      %v290 = vunpack.c.l.b16 %v262
      %v291 = vpack.c.b16 %v288, %v287
      %v292 = vpack.c.b16 %v290, %v289
      %v301 = vunpack.c.l.b16 %v263
      %v302 = vunpack.c.l.b16 %v264
      %v303 = vunpack.c.l.b16 %v265
      %v304 = vunpack.c.l.b16 %v266
      %v305 = vunpack.c.l.b16 %v267
      %v306 = vunpack.c.l.b16 %v268
      %v307 = vunpack.c.l.b16 %v269
      %v308 = vunpack.c.l.b16 %v270
      %v309 = vpack.c.b16 %v302, %v301
      %v310 = vpack.c.b16 %v304, %v303
      %v311 = vpack.c.b16 %v306, %v305
      %v312 = vpack.c.b16 %v308, %v307
      %vm313 = vcmask 261120
      %v315 = vsel %vm313, %v291, 0
      %v318 = vsel %vm313, %v292, 0
      %v321 = vsel %vm313, %v309, 0
      %v324 = vsel %vm313, %v310, 0
      %v327 = vsel %vm313, %v311, 0
      %v330 = vsel %vm313, %v312, 0
      %332 = vmatpush.bf16.xpose.msra.mxu0 0
      %333 = vmatpush.bf16.xpose.msra.mxu0 0
      %334 = vmatpush.bf16.xpose.msra.mxu0 0
      %335 = vmatpush.bf16.xpose.msra.mxu0 0
      %336 = vmatpush.bf16.xpose.msra.mxu0 %v330
      %337 = vmatpush.bf16.xpose.msra.mxu0 %v327
      %338 = vmatpush.bf16.xpose.msra.mxu0 %v324
      %339 = vmatpush.bf16.xpose.msra.mxu0 %v321
      %340 = vmatmul.bf16.gmra.mxu0 %v315
      %v341 = vpop.f32.mrf.mxu0
      %v342 = vadd.f32 0.0, %v341
      %v343 = vpop.f32.mrf.mxu0
      %v344 = vadd.f32 0.0, %v343
      %345 = vmatmul.bf16.gmra.mxu0 %v318
      %v346 = vpop.f32.mrf.mxu0
      %v347 = vadd.f32 0.0, %v346
      %v348 = vpop.f32.mrf.mxu0
      %v349 = vadd.f32 0.0, %v348
      %350 = vdwg.mxu0
      %v351 = vmul.f32 %v342, 0.17677669
      %v352 = vmul.f32 %v344, 0.17677669
      %v353 = vmul.f32 %v347, 0.17677669
      %v354 = vmul.f32 %v349, 0.17677669
      %v355 = vlaneseq
      %v356 = vand.u32 %v355, 127
      %357 = vset.pattern.permute.xlu0 0
      %358 = vperm.xlu0 %357, %v279
      %v359 = vpop.permute.xlu0 %358
      %360 = vset.pattern.permute.xlu0 0
      %361 = vperm.xlu0 %360, %v280
      %v362 = vpop.permute.xlu0 %361
      %363 = vset.pattern.permute.xlu0 0
      %364 = vperm.xlu0 %363, %v281
      %v365 = vpop.permute.xlu0 %364
      %366 = vset.pattern.permute.xlu0 0
      %367 = vperm.xlu0 %366, %v282
      %v368 = vpop.permute.xlu0 %367
      %vm369 = vcmp.gt.s32.totalorder %v356, %v359
      %vm370 = vcmp.gt.s32.totalorder %v356, %v362
      %vm371 = vcmp.gt.s32.totalorder %v356, %v365
      %vm372 = vcmp.gt.s32.totalorder %v356, %v368
      %v373 = vsel %vm369, -inf, %v351
      %v374 = vsel %vm370, -inf, %v352
      %v375 = vsel %vm371, -inf, %v353
      %v376 = vsel %vm372, -inf, %v354
      %vm377 = vcmask 523264
      %v378 = vsel %vm377, %v373, -inf
      %379 = vmax.xlane.f32.xlu0 %v378
      %v380 = vpop.xlane.xlu0 %379
      %v381 = vsel %vm377, %v374, -inf
      %382 = vmax.xlane.f32.xlu0 %v381
      %v383 = vpop.xlane.xlu0 %382
      %v384 = vsel %vm377, %v375, -inf
      %385 = vmax.xlane.f32.xlu0 %v384
      %v386 = vpop.xlane.xlu0 %385
      %v387 = vsel %vm377, %v376, -inf
      %388 = vmax.xlane.f32.xlu0 %v387
      %v389 = vpop.xlane.xlu0 %388
      %v390 = vsub.f32 %v373, %v380
      %v391 = vsub.f32 %v374, %v383
      %v392 = vsub.f32 %v375, %v386
      %v393 = vsub.f32 %v376, %v389
      %v394 = vmul.f32 %v390, 1.442695
      %v395 = vpow.pop %v394
      %v396 = vmul.f32 %v391, 1.442695
      %v397 = vpow.pop %v396
      %v398 = vmul.f32 %v392, 1.442695
      %v399 = vpow.pop %v398
      %v400 = vmul.f32 %v393, 1.442695
      %v401 = vpow.pop %v400
      %v402 = vsel %vm377, %v395, 0.0
      %403 = vadd.xlane.f32.xlu0 %v402
      %v404 = vpop.xlane.xlu0 %403
      %v405 = vsel %vm377, %v397, 0.0
      %406 = vadd.xlane.f32.xlu0 %v405
      %v407 = vpop.xlane.xlu0 %406
      %v408 = vsel %vm377, %v399, 0.0
      %409 = vadd.xlane.f32.xlu0 %v408
      %v410 = vpop.xlane.xlu0 %409
      %v411 = vsel %vm377, %v401, 0.0
      %412 = vadd.xlane.f32.xlu0 %v411
      %v413 = vpop.xlane.xlu0 %412
      %v414 = vpack.c.bf16 %v397, %v395
      %v415 = vpack.c.bf16 %v401, %v399
      %v424 = vunpack.c.l.b16 %v271
      %v425 = vunpack.c.l.b16 %v272
      %v426 = vunpack.c.l.b16 %v273
      %v427 = vunpack.c.l.b16 %v274
      %v428 = vunpack.c.l.b16 %v275
      %v429 = vunpack.c.l.b16 %v276
      %v430 = vunpack.c.l.b16 %v277
      %v431 = vunpack.c.l.b16 %v278
      %v432 = vpack.c.b16 %v425, %v424
      %v433 = vpack.c.b16 %v427, %v426
      %v434 = vpack.c.b16 %v429, %v428
      %v435 = vpack.c.b16 %v431, %v430
      %v441 = vsel %vm377, %v414, 0
      %v444 = vsel %vm377, %v415, 0
      %446 = vmatpush.bf16.msra.mxu0 0
      %447 = vmatpush.bf16.msra.mxu0 0
      %448 = vmatpush.bf16.msra.mxu0 0
      %449 = vmatpush.bf16.msra.mxu0 0
      %450 = vmatpush.bf16.msra.mxu0 %v435
      %451 = vmatpush.bf16.msra.mxu0 %v434
      %452 = vmatpush.bf16.msra.mxu0 %v433
      %453 = vmatpush.bf16.msra.mxu0 %v432
      %454 = vmatmul.bf16.gmra.mxu0 %v441
      %v455 = vpop.f32.mrf.mxu0
      %v456 = vadd.f32 0.0, %v455
      %v457 = vpop.f32.mrf.mxu0
      %v458 = vadd.f32 0.0, %v457
      %459 = vmatmul.bf16.gmra.mxu0 %v444
      %v460 = vpop.f32.mrf.mxu0
      %v461 = vadd.f32 0.0, %v460
      %v462 = vpop.f32.mrf.mxu0
      %v463 = vadd.f32 0.0, %v462
      %464 = vdwg.mxu0
      %v465 = vrcp.pop %v404
      %v466 = vrcp.pop %v407
      %v467 = vrcp.pop %v410
      %v468 = vrcp.pop %v413
      %v469 = vmul.f32 %v456, %v465
      %v470 = vmul.f32 %v458, %v466
      %v471 = vmul.f32 %v461, %v467
      %v472 = vmul.f32 %v463, %v468
      %473 = vst.msk [vmem:[%s257] sm:$0xff] %vm313, %v469
      %474 = vst.msk [vmem:[%s257 + $0x8] sm:$0xff] %vm313, %v470
      %475 = vst.msk [vmem:[%s257 + $0x10] sm:$0xff] %vm313, %v471
      %476 = vst.msk [vmem:[%s257 + $0x18] sm:$0xff] %vm313, %v472
      %p477 = scmp.lt.s32.totalorder %s15, 7
      %s478 = scalar_select %p477, %s15, 7
      %s479 = smul.addr %s478, 4
      %s480 = smul.addr %s479, 8
      %s481 = scalar_lea.vmem %s4, %s480
      // Predicated region
      $region37: #{_prob_attention_impl.3} parent=35 // pred_check
        %p482 = pneg %p137
      $region38: #{_prob_attention_impl.3} parent=35 // pred_check_branch
        %484 = sbr.rel (%p482) target = $region40
      $region39: #{_prob_attention_impl.3} parent=35 // pred_region
        _
      $region40: #{_prob_attention_impl.3} parent=35 // pred_fallthru
        _
    $region36: #{_prob_attention_impl.3} parent=5 // pred_fallthru
      _
    %p485 = scmp.le.s32.totalorder 2, %s10
    // Predicated region
    $region41: #{_prob_attention_impl.3} parent=5 // pred_check
      %p486 = pneg %p485
    $region42: #{_prob_attention_impl.3} parent=5 // pred_check_branch
      %488 = sbr.rel (%p486) target = $region44
    $region43: #{_prob_attention_impl.3} parent=5 // pred_region
      %s489 = ssub.s32 %s10, 2
      // Predicated region
      $region45: #{_prob_attention_impl.3} parent=43 // pred_check
        %p490 = pneg %p143
      $region46: #{_prob_attention_impl.3} parent=43 // pred_check_branch
        %492 = sbr.rel (%p490) target = $region48
      $region47: #{_prob_attention_impl.3} parent=43 // pred_region
        %p493 = scmp.lt.s32.totalorder %s16, 7
        %s494 = scalar_select %p493, %s16, 7
        %s495 = smul.addr %s494, 4
        %s496 = smul.addr %s495, 8
        %s497 = scalar_lea.vmem %s4, %s496
      $region48: #{_prob_attention_impl.3} parent=43 // pred_fallthru
        _
    $region44: #{_prob_attention_impl.3} parent=5 // pred_fallthru
      _
  $region6: #{_prob_attention_impl.3} parent=0 // loop_footer
    %s14 = sadd.s32 1, %s10
  $region7: #{_prob_attention_impl.3} parent=0 // loop_footer_branch
    %9 = sbr.rel target = $region3
  $region8: #{_prob_attention_impl.3} parent=0 // loop_exit
    _

</llo_original>
